<compile_context>
chip_gen: v7x
topology: tpu7x:2x2x1
jax: 0.10.0
libtpu: 0.0.40
codegen_flags: <defaults>
</compile_context>

<pallas_src>
import functools

import jax
import jax.numpy as jnp
from jax import lax
from jax.experimental import pallas as pl
from jax.experimental.pallas import tpu as pltpu


def _dice_kernel(x_ref, t_ref, dice_ref, inter_acc, total_acc,
                 *, eps, n_valid, needs_mask):
    # x_ref    : (1, C, TILE_N) logits tile for one batch element
    # t_ref    : (1, 1, TILE_N) int32 target labels tile
    # dice_ref : (1, C, 1)      per-class dice for this batch element (written
    #                           only on the last spatial step)
    # inter_acc/total_acc : (C, 1) f32 VMEM accumulators
    n_idx = pl.program_id(1)

    @pl.when(n_idx == 0)
    def _():
        inter_acc[...] = jnp.zeros_like(inter_acc)
        total_acc[...] = jnp.zeros_like(total_acc)

    x = x_ref[0].astype(jnp.float32)          # (C, TILE_N)
    t = t_ref[0]                              # (1, TILE_N) int32
    tile_n = x.shape[1]

    # --- channel softmax (axis 0), max-stabilized ---------------------------
    m = jnp.max(x, axis=0, keepdims=True)     # (1, TILE_N)
    e = jnp.exp(x - m)                        # (C, TILE_N)
    s = jnp.sum(e, axis=0, keepdims=True)     # (1, TILE_N)
    r = pl.reciprocal(s, approx=True)         # EUP reciprocal (free slot)
    r = r * (2.0 - s * r)                     # one Newton step -> ~f32 accuracy
    p = e * r                                 # (C, TILE_N)

    # --- mask out spatial padding (only emitted if N % TILE_N != 0) ---------
    if needs_mask:
        lane = lax.broadcasted_iota(jnp.int32, (1, tile_n), 1) + n_idx * tile_n
        p = jnp.where(lane < n_valid, p, 0.0)

    # --- fused per-class reductions over the lane axis ----------------------
    ch_ids = lax.broadcasted_iota(jnp.int32, p.shape, 0)   # (C, TILE_N)
    match = ch_ids == t                                    # padded t == C -> never matches
    onehot = match.astype(jnp.float32)

    inter_acc[...] += jnp.sum(jnp.where(match, p, 0.0), axis=1, keepdims=True)
    total_acc[...] += jnp.sum(p + onehot, axis=1, keepdims=True)

    @pl.when(n_idx == pl.num_programs(1) - 1)
    def _():
        dice_ref[0] = (2.0 * inter_acc[...] + eps) / (total_acc[...] + eps)


def dice_loss_pallas(logits, targets, eps=1e-6, *,
                     max_tile_n=16384, compute_dtype=jnp.float32):
    """logits: (B, C, H, W) float ; targets: (B, H, W) integer class labels.

    compute_dtype: dtype the logits are streamed from HBM in (bf16 halves
    traffic on memory-bound v5e/v6e; compute is f32 inside the kernel).
    max_tile_n: cap on the spatial (lane) tile.  The default is conservative
    enough for v7x's 64 MiB VMEM; it can be raised on v5e/v6e (128 MiB).
    """
    B, C, H, W = logits.shape
    N = H * W
    bytes_per_elem = jnp.dtype(compute_dtype).itemsize

    # Spatial tile: multiple of 128 lanes, sized so each grid step moves ~1 MiB
    # of logits (amortizes the ~0.35 us/step grid overhead) without blowing the
    # scoped-VMEM budget on any generation.
    target_bytes = 1 << 20
    tile_n = -(-target_bytes // (C * bytes_per_elem))
    tile_n = -(-tile_n // 128) * 128
    tile_n = min(tile_n, max_tile_n)
    n_pad_128 = -(-N // 128) * 128
    tile_n = min(tile_n, n_pad_128)

    num_tiles = -(-N // tile_n)
    n_pad = num_tiles * tile_n

    x = logits.astype(compute_dtype).reshape(B, C, N)
    t = targets.astype(jnp.int32).reshape(B, 1, N)
    if n_pad != N:
        x = jnp.pad(x, ((0, 0), (0, 0), (0, n_pad - N)))
        # pad with out-of-range class id so the one-hot of padding is all-zero
        t = jnp.pad(t, ((0, 0), (0, 0), (0, n_pad - N)), constant_values=C)

    # Double-buffered inputs + ~5 live (C, TILE_N) f32 temporaries, with headroom.
    block_bytes = C * tile_n * max(bytes_per_elem, 4)
    vmem_limit = int(min(64 * 1024 * 1024, max(16 * 1024 * 1024, 16 * block_bytes)))

    dice = pl.pallas_call(
        functools.partial(_dice_kernel, eps=eps, n_valid=N,
                          needs_mask=(n_pad != N)),
        out_shape=jax.ShapeDtypeStruct((B, C, 1), jnp.float32),
        grid=(B, num_tiles),
        in_specs=[
            pl.BlockSpec((1, C, tile_n), lambda b, n: (b, 0, n)),
            pl.BlockSpec((1, 1, tile_n), lambda b, n: (b, 0, n)),
        ],
        out_specs=pl.BlockSpec((1, C, 1), lambda b, n: (b, 0, 0)),
        scratch_shapes=[
            pltpu.VMEM((C, 1), jnp.float32),   # per-class intersection
            pltpu.VMEM((C, 1), jnp.float32),   # per-class total
        ],
        compiler_params=pltpu.CompilerParams(
            dimension_semantics=("parallel", "arbitrary"),
            vmem_limit_bytes=vmem_limit),
    )(x, t)

    dice = dice[:, :, 0]                          # (B, C)
    per_batch = jnp.mean(dice, axis=1)            # mean over classes
    return 1.0 - jnp.mean(per_batch)              # mean over batch, then 1 - .


def dice_loss_ref(logits, targets, eps=1e-6):
    """Pure-JAX reference matching the PyTorch module."""
    B, C, H, W = logits.shape
    p = jax.nn.softmax(logits.astype(jnp.float32), axis=1)
    onehot = jax.nn.one_hot(targets, C, dtype=jnp.float32)   # (B, H, W, C)
    onehot = jnp.transpose(onehot, (0, 3, 1, 2))             # (B, C, H, W)
    pf = p.reshape(B, C, -1)
    tf = onehot.reshape(B, C, -1)
    inter = jnp.sum(pf * tf, axis=2)
    total = jnp.sum(pf, axis=2) + jnp.sum(tf, axis=2)
    dice = (2.0 * inter + eps) / (total + eps)
    return 1.0 - jnp.mean(jnp.mean(dice, axis=1))


if __name__ == "__main__":
    B, C, H, W = 2, 4, 16, 16
    key = jax.random.PRNGKey(0)
    k1, k2 = jax.random.split(key)
    logits = jax.random.normal(k1, (B, C, H, W), dtype=jnp.float32)
    targets = jax.random.randint(k2, (B, H, W), 0, C, dtype=jnp.int32)

    # f32 path (exact semantics of the PyTorch module)
    loss = jax.block_until_ready(dice_loss_pallas(logits, targets))
    ref = dice_loss_ref(logits, targets)
    assert jnp.allclose(loss, ref, atol=1e-5, rtol=1e-5), (loss, ref)

    # shape that exercises spatial tiling + tail masking (N not a tile multiple)
    H2, W2 = 40, 37
    k3, k4 = jax.random.split(k2)
    logits2 = jax.random.normal(k3, (B, C, H2, W2), dtype=jnp.float32)
    targets2 = jax.random.randint(k4, (B, H2, W2), 0, C, dtype=jnp.int32)
    loss2 = jax.block_until_ready(
        dice_loss_pallas(logits2, targets2, max_tile_n=512))
    ref2 = dice_loss_ref(logits2, targets2)
    assert jnp.allclose(loss2, ref2, atol=1e-5, rtol=1e-5), (loss2, ref2)

    # bf16 input path (halves logits HBM traffic; looser numeric tolerance)
    loss_bf16 = jax.block_until_ready(
        dice_loss_pallas(logits, targets, compute_dtype=jnp.bfloat16))
    assert jnp.allclose(loss_bf16, ref, atol=2e-2), (loss_bf16, ref)

    print("KERNEL_OK")
</pallas_src>

<mosaic_0001>
module attributes {stable_mosaic.version = 11 : i64} {
  func.func @_dice_kernel(%arg0: i32, %arg1: i32, %arg2: memref<1x4x256xf32, #tpu.memory_space<vmem>>, %arg3: memref<1x1x256xi32, #tpu.memory_space<vmem>>, %arg4: memref<1x4x1xf32, #tpu.memory_space<vmem>>, %arg5: memref<4x1xf32, #tpu.memory_space<vmem>>, %arg6: memref<4x1xf32, #tpu.memory_space<vmem>>) attributes {dimension_semantics = [#tpu.dimension_semantics<parallel>, #tpu.dimension_semantics<arbitrary>], iteration_bounds = array<i64: 2, 1>, scalar_prefetch = 0 : i64, scratch_operands = 2 : i64, tpu.core_type = #tpu.core_type<tc>, window_params = [{transform_indices = @transform_0, window_bounds = array<i64: 1, 4, 256>}, {transform_indices = @transform_1, window_bounds = array<i64: 1, 1, 256>}, {transform_indices = @transform_2, window_bounds = array<i64: 1, 4, 1>}]} {
    %c0_i32 = arith.constant 0 : i32
    %0 = arith.cmpi eq, %arg1, %c0_i32 : i32
    %1 = arith.extui %0 : i1 to i32
    %c0_i32_0 = arith.constant 0 : i32
    %2 = arith.cmpi ne, %1, %c0_i32_0 : i32
    scf.if %2 {
      %cst_21 = arith.constant 0.000000e+00 : f32
      %42 = vector.broadcast %cst_21 : f32 to vector<4x1xf32>
      %c0_22 = arith.constant 0 : index
      %c0_23 = arith.constant 0 : index
      %43 = vector.load %arg5[%c0_22, %c0_23] : memref<4x1xf32, #tpu.memory_space<vmem>>, vector<4x1xf32>
      tpu.vector_store %arg5[%c0_22, %c0_23], %42 {strides = array<i32>} : memref<4x1xf32, #tpu.memory_space<vmem>>, vector<4x1xf32>,
      %cst_24 = arith.constant 0.000000e+00 : f32
      %44 = vector.broadcast %cst_24 : f32 to vector<4x1xf32>
      %c0_25 = arith.constant 0 : index
      %c0_26 = arith.constant 0 : index
      %45 = vector.load %arg6[%c0_25, %c0_26] : memref<4x1xf32, #tpu.memory_space<vmem>>, vector<4x1xf32>
      tpu.vector_store %arg6[%c0_25, %c0_26], %44 {strides = array<i32>} : memref<4x1xf32, #tpu.memory_space<vmem>>, vector<4x1xf32>,
    } else {
    }
    %c0 = arith.constant 0 : index
    %c0_1 = arith.constant 0 : index
    %c0_2 = arith.constant 0 : index
    %3 = vector.load %arg2[%c0, %c0_1, %c0_2] : memref<1x4x256xf32, #tpu.memory_space<vmem>>, vector<1x4x256xf32>
    %4 = vector.shape_cast %3 : vector<1x4x256xf32> to vector<4x256xf32>
    %c0_3 = arith.constant 0 : index
    %c0_4 = arith.constant 0 : index
    %c0_5 = arith.constant 0 : index
    %5 = vector.load %arg3[%c0_3, %c0_4, %c0_5] : memref<1x1x256xi32, #tpu.memory_space<vmem>>, vector<1x1x256xi32>
    %6 = vector.shape_cast %5 : vector<1x1x256xi32> to vector<1x256xi32>
    %cst = arith.constant dense<0xFF800000> : vector<256xf32>
    %7 = vector.multi_reduction <maximumf>, %4, %cst [0] : vector<4x256xf32> to vector<256xf32>
    %8 = vector.shape_cast %7 : vector<256xf32> to vector<1x256xf32>
    %9 = vector.broadcast %8 : vector<1x256xf32> to vector<4x256xf32>
    %10 = arith.subf %4, %9 : vector<4x256xf32>
    %11 = math.exp %10 : vector<4x256xf32>
    %cst_6 = arith.constant dense<0.000000e+00> : vector<256xf32>
    %12 = vector.multi_reduction <add>, %11, %cst_6 [0] : vector<4x256xf32> to vector<256xf32>
    %13 = vector.shape_cast %12 : vector<256xf32> to vector<1x256xf32>
    %14 = tpu.reciprocal %13 {approx = true} : vector<1x256xf32> -> vector<1x256xf32>
    %15 = arith.mulf %13, %14 : vector<1x256xf32>
    %cst_7 = arith.constant 2.000000e+00 : f32
    %16 = vector.broadcast %cst_7 : f32 to vector<1x256xf32>
    %17 = arith.subf %16, %15 : vector<1x256xf32>
    %18 = arith.mulf %14, %17 : vector<1x256xf32>
    %19 = vector.broadcast %18 : vector<1x256xf32> to vector<4x256xf32>
    %20 = arith.mulf %11, %19 : vector<4x256xf32>
    %21 = tpu.iota {dimensions = array<i32: 0>} : vector<4x256xi32>
    %22 = vector.broadcast %6 : vector<1x256xi32> to vector<4x256xi32>
    %23 = arith.cmpi eq, %21, %22 : vector<4x256xi32>
    %24 = arith.extui %23 : vector<4x256xi1> to vector<4x256xi32>
    %25 = arith.sitofp %24 : vector<4x256xi32> to vector<4x256xf32>
    %c0_8 = arith.constant 0 : index
    %c0_9 = arith.constant 0 : index
    %26 = vector.load %arg5[%c0_8, %c0_9] : memref<4x1xf32, #tpu.memory_space<vmem>>, vector<4x1xf32>
    %cst_10 = arith.constant 0.000000e+00 : f32
    %27 = vector.broadcast %cst_10 : f32 to vector<4x256xf32>
    %28 = arith.select %23, %20, %27 : vector<4x256xi1>, vector<4x256xf32>
    %cst_11 = arith.constant dense<0.000000e+00> : vector<4xf32>
    %29 = vector.multi_reduction <add>, %28, %cst_11 [1] : vector<4x256xf32> to vector<4xf32>
    %30 = vector.shape_cast %29 : vector<4xf32> to vector<4x1xf32>
    %31 = arith.addf %26, %30 : vector<4x1xf32>
    %c0_12 = arith.constant 0 : index
    %c0_13 = arith.constant 0 : index
    %32 = vector.load %arg5[%c0_12, %c0_13] : memref<4x1xf32, #tpu.memory_space<vmem>>, vector<4x1xf32>
    tpu.vector_store %arg5[%c0_12, %c0_13], %31 {strides = array<i32>} : memref<4x1xf32, #tpu.memory_space<vmem>>, vector<4x1xf32>,
    %c0_14 = arith.constant 0 : index
    %c0_15 = arith.constant 0 : index
    %33 = vector.load %arg6[%c0_14, %c0_15] : memref<4x1xf32, #tpu.memory_space<vmem>>, vector<4x1xf32>
    %34 = arith.addf %20, %25 : vector<4x256xf32>
    %cst_16 = arith.constant dense<0.000000e+00> : vector<4xf32>
    %35 = vector.multi_reduction <add>, %34, %cst_16 [1] : vector<4x256xf32> to vector<4xf32>
    %36 = vector.shape_cast %35 : vector<4xf32> to vector<4x1xf32>
    %37 = arith.addf %33, %36 : vector<4x1xf32>
    %c0_17 = arith.constant 0 : index
    %c0_18 = arith.constant 0 : index
    %38 = vector.load %arg6[%c0_17, %c0_18] : memref<4x1xf32, #tpu.memory_space<vmem>>, vector<4x1xf32>
    tpu.vector_store %arg6[%c0_17, %c0_18], %37 {strides = array<i32>} : memref<4x1xf32, #tpu.memory_space<vmem>>, vector<4x1xf32>,
    %c0_i32_19 = arith.constant 0 : i32
    %39 = arith.cmpi eq, %arg1, %c0_i32_19 : i32
    %40 = arith.extui %39 : i1 to i32
    %c0_i32_20 = arith.constant 0 : i32
    %41 = arith.cmpi ne, %40, %c0_i32_20 : i32
    scf.if %41 {
      %c0_21 = arith.constant 0 : index
      %c0_22 = arith.constant 0 : index
      %42 = vector.load %arg5[%c0_21, %c0_22] : memref<4x1xf32, #tpu.memory_space<vmem>>, vector<4x1xf32>
      %cst_23 = arith.constant 2.000000e+00 : f32
      %43 = vector.broadcast %cst_23 : f32 to vector<4x1xf32>
      %44 = arith.mulf %43, %42 : vector<4x1xf32>
      %cst_24 = arith.constant 9.99999997E-7 : f32
      %45 = vector.broadcast %cst_24 : f32 to vector<4x1xf32>
      %46 = arith.addf %44, %45 : vector<4x1xf32>
      %c0_25 = arith.constant 0 : index
      %c0_26 = arith.constant 0 : index
      %47 = vector.load %arg6[%c0_25, %c0_26] : memref<4x1xf32, #tpu.memory_space<vmem>>, vector<4x1xf32>
      %cst_27 = arith.constant 9.99999997E-7 : f32
      %48 = vector.broadcast %cst_27 : f32 to vector<4x1xf32>
      %49 = arith.addf %47, %48 : vector<4x1xf32>
      %50 = arith.divf %46, %49 : vector<4x1xf32>
      %c0_28 = arith.constant 0 : index
      %c0_29 = arith.constant 0 : index
      %c0_30 = arith.constant 0 : index
      %51 = vector.load %arg4[%c0_28, %c0_29, %c0_30] : memref<1x4x1xf32, #tpu.memory_space<vmem>>, vector<1x4x1xf32>
      %52 = vector.shape_cast %51 : vector<1x4x1xf32> to vector<4x1xf32>
      %53 = vector.shape_cast %50 : vector<4x1xf32> to vector<1x4x1xf32>
      tpu.vector_store %arg4[%c0_28, %c0_29, %c0_30], %53 {strides = array<i32>} : memref<1x4x1xf32, #tpu.memory_space<vmem>>, vector<1x4x1xf32>,
    } else {
    }
    return
  }
  func.func @transform_0(%arg0: i32, %arg1: i32) -> (i32, i32, i32) {
    %c0_i32 = arith.constant 0 : i32
    %c0_i32_0 = arith.constant 0 : i32
    return %arg0, %c0_i32, %arg1 : i32, i32, i32
  }
  func.func @transform_1(%arg0: i32, %arg1: i32) -> (i32, i32, i32) {
    %c0_i32 = arith.constant 0 : i32
    %c0_i32_0 = arith.constant 0 : i32
    return %arg0, %c0_i32, %arg1 : i32, i32, i32
  }
  func.func @transform_2(%arg0: i32, %arg1: i32) -> (i32, i32, i32) {
    %c0_i32 = arith.constant 0 : i32
    %c0_i32_0 = arith.constant 0 : i32
    %c0_i32_1 = arith.constant 0 : i32
    return %arg0, %c0_i32, %c0_i32_0 : i32, i32, i32
  }
}

</mosaic_0001>

<llo_original>
// kernel: tpu_custom_call.1
$region0: #{tpu_custom_call.1}
  #allocation0 [shape = 'u32[]', space=smem, size = 0x4, offset = 0x4, fixed_abs, tag = 'smem constant byte address 0x4 - core index']
  #allocation1 [shape = 'u32[144,128]{1,0:T(1,128)}', space=vmem, size = 0x12000, scoped, tag = 'internal scratch']
  #allocation2 [shape = 'f32[4,1]{1,0:T(4,128)}', space=vmem, size = 0x800, scoped, tag = 'scratch operand']
  #allocation3 [shape = 'f32[4,1]{1,0:T(4,128)}', space=vmem, size = 0x800, scoped, tag = 'scratch operand']
  %s0 = inlined_call_operand.hbm [shape: f32[2,4,256], index: 0, kind: input, shape index: {}]
  %s1 = inlined_call_operand.hbm [shape: s32[2,1,256], index: 1, kind: input, shape index: {}]
  %s2 = inlined_call_operand.vmem [shape: f32[2,4,1], index: 2, kind: output, shape index: {}]
  %s3 = sld [smem:[#allocation0]]
  $region57: #{tpu_custom_call.1} parent=0
    _
  %s5 = ssub.s32 1, %s3
  %s6 = scalar_select 0, %s5, %s3
  $region1: #{tpu_custom_call.1} parent=0
    #allocation4 [shape = 'u8[8192]{0}', space=vmem, size = 0x2000, scoped, tag = 'input window, operand 0']
    #allocation5 [shape = 's32[2]{0}', space=sflag, size = 0x8, scoped, tag = 'scoped memory for tpu_custom_call.1']
    #allocation6 [shape = 'u8[2048]{0}', space=vmem, size = 0x800, scoped, tag = 'input window, operand 1']
    #allocation7 [shape = 's32[2]{0}', space=sflag, size = 0x8, scoped, tag = 'scoped memory for tpu_custom_call.1']
    %7 = vsyncpa [#allocation5], 0
    %s8 = scalar_lea.sflag [#allocation5], 1
    %9 = vsyncpa %s8, 0
    %10 = vsyncpa [#allocation7], 0
    %s11 = scalar_lea.sflag [#allocation7], 1
    %12 = vsyncpa %s11, 0
    loop: start=0, step=1, limit=4
    $region2: #{tpu_custom_call.1} parent=1 // loop_pre_header
      _
    $region3: #{tpu_custom_call.1} parent=1 // loop_header
      %s14 = sphi 0, %s18
      %p15 = scmp.ge.s32.totalorder %s14, 4
      %s21 = sphi 0, %s33
      %s22 = sphi 0, %s29
      %s23 = sphi 0, %s21
      %s24 = sphi 0, %s22
      %s25 = sphi 0, %s23
      %s26 = sphi 0, %s24
      %s38 = sphi 0, %s40
      %s41 = sphi 0, %s38
      %s42 = sphi 0, %s41
      %s58 = sphi 0, %s42
      %s66 = sphi 0, %s68
      %s69 = sphi 0, %s66
      %s70 = sphi 0, %s69
      %s86 = sphi 0, %s70
      %s92 = sphi 0, %s94
      %s95 = sphi 0, %s92
      %s96 = sphi 0, %s95
      %s112 = sphi 0, %s96
    $region4: #{tpu_custom_call.1} parent=1 // loop_header_branch
      %17 = sbr.rel (%p15) target = $region8
    $region5: #{tpu_custom_call.1} parent=1 // loop_body
      %s19 = ssub.s32 %s14, 1
      %s20 = ssub.s32 %s14, 2
      %s27 = sadd.s32 1, %s22
      %p28 = scmp.ge.s32.totalorder %s27, 1
      %s29 = scalar_select %p28, 0, %s27
      %s30 = sadd.s32 1, %s21
      %s31 = scalar_select %p28, %s30, %s21
      %p32 = scmp.ge.s32.totalorder %s31, 2
      %s33 = scalar_select %p32, 0, %s31
      %s34 = ssub.s32 %s21, %s33
      %s35 = ssub.s32 %s22, %s29
      %s36 = sor.u32 %s34, %s35
      %p37 = scmp.eq.s32.totalorder %s36, 0
      %s39 = sadd.s32 %s38, 1
      %s40 = scalar_select %p37, %s38, %s39
      %p43 = pneg %p37
      %p44 = scmp.eq.s32.totalorder %s14, 1
      %p45 = por %p43, %p44
      %p46 = scmp.ne.s32.totalorder %s38, %s41
      %p47 = scmp.eq.s32.totalorder %s14, 0
      %p48 = por %p46, %p47
      %p49 = scmp.ne.s32.totalorder %s38, %s41
      %p50 = scmp.eq.s32.totalorder %s19, 1
      %p51 = por %p49, %p50
      %p52 = scmp.ne.s32.totalorder %s41, %s42
      %p53 = scmp.eq.s32.totalorder %s19, 0
      %p54 = por %p52, %p53
      %p55 = scmp.ne.s32.totalorder %s41, %s42
      %p56 = scmp.eq.s32.totalorder %s20, 1
      %p57 = por %p55, %p56
      %p59 = scmp.ne.s32.totalorder %s42, %s58
      %p60 = scmp.eq.s32.totalorder %s20, 0
      %p61 = por %p59, %p60
      %s62 = ssub.s32 %s21, %s33
      %s63 = ssub.s32 %s22, %s29
      %s64 = sor.u32 %s62, %s63
      %p65 = scmp.eq.s32.totalorder %s64, 0
      %s67 = sadd.s32 %s66, 1
      %s68 = scalar_select %p65, %s66, %s67
      %p71 = pneg %p65
      %p72 = scmp.eq.s32.totalorder %s14, 1
      %p73 = por %p71, %p72
      %p74 = scmp.ne.s32.totalorder %s66, %s69
      %p75 = scmp.eq.s32.totalorder %s14, 0
      %p76 = por %p74, %p75
      %p77 = scmp.ne.s32.totalorder %s66, %s69
      %p78 = scmp.eq.s32.totalorder %s19, 1
      %p79 = por %p77, %p78
      %p80 = scmp.ne.s32.totalorder %s69, %s70
      %p81 = scmp.eq.s32.totalorder %s19, 0
      %p82 = por %p80, %p81
      %p83 = scmp.ne.s32.totalorder %s69, %s70
      %p84 = scmp.eq.s32.totalorder %s20, 1
      %p85 = por %p83, %p84
      %p87 = scmp.ne.s32.totalorder %s70, %s86
      %p88 = scmp.eq.s32.totalorder %s20, 0
      %p89 = por %p87, %p88
      %s90 = ssub.s32 %s21, %s33
      %p91 = scmp.eq.s32.totalorder %s90, 0
      %s93 = sadd.s32 %s92, 1
      %s94 = scalar_select %p91, %s92, %s93
      %p97 = pneg %p91
      %p98 = scmp.eq.s32.totalorder %s14, 1
      %p99 = por %p97, %p98
      %p100 = scmp.ne.s32.totalorder %s92, %s95
      %p101 = scmp.eq.s32.totalorder %s14, 0
      %p102 = por %p100, %p101
      %p103 = scmp.ne.s32.totalorder %s92, %s95
      %p104 = scmp.eq.s32.totalorder %s19, 1
      %p105 = por %p103, %p104
      %p106 = scmp.ne.s32.totalorder %s95, %s96
      %p107 = scmp.eq.s32.totalorder %s19, 0
      %p108 = por %p106, %p107
      %p109 = scmp.ne.s32.totalorder %s95, %s96
      %p110 = scmp.eq.s32.totalorder %s20, 1
      %p111 = por %p109, %p110
      %p113 = scmp.ne.s32.totalorder %s96, %s112
      %p114 = scmp.eq.s32.totalorder %s20, 0
      %p115 = por %p113, %p114
      %p116 = scmp.le.s32.totalorder 1, %s14
      %p117 = scmp.lt.s32.totalorder %s14, 3
      %p118 = pnand %p116, %p117
      %p119 = pneg %p118
      // Predicated region
      $region9: #{tpu_custom_call.1} parent=5 // pred_check
        _
      $region10: #{tpu_custom_call.1} parent=5 // pred_check_branch
        %121 = sbr.rel (%p118) target = $region12
      $region11: #{tpu_custom_call.1} parent=5 // pred_region
        %s122 = ssub.s32 %s14, 1
      $region12: #{tpu_custom_call.1} parent=5 // pred_fallthru
        _
      %p123 = scmp.lt.s32.totalorder %s14, 2
      // Predicated region
      $region13: #{tpu_custom_call.1} parent=5 // pred_check
        %p124 = pneg %p123
      $region14: #{tpu_custom_call.1} parent=5 // pred_check_branch
        %126 = sbr.rel (%p124) target = $region16
      $region15: #{tpu_custom_call.1} parent=5 // pred_region
        // Predicated region
        $region17: #{tpu_custom_call.1} parent=15 // pred_check
          %p127 = pneg %p48
        $region18: #{tpu_custom_call.1} parent=15 // pred_check_branch
          %129 = sbr.rel (%p127) target = $region20
        $region19: #{tpu_custom_call.1} parent=15 // pred_region
          %s130 = sand.u32 %s38, 1
          %s131 = scalar_lea.sflag [#allocation5], %s130
          %s132 = sand.u32 %s38, 1
          %s133 = smul.addr %s132, 8
          %s134 = scalar_lea.vmem [#allocation4], %s133
          %s135 = smul.u32 2, %s22
          %s137 = ssub.s32 128, 128
          %138 = vsyncadd %s131, %s137
          %s139 = smul.addr %s21, 2
          %s140 = sadd.s32 %s135, %s139
          %s141 = smul.addr %s140, 64
          %s142 = scalar_lea.hbm %s0, %s141
          %s144 = sshll.u32 %s134, 4
          %s145 = int_to_ptr.vmem [resolvable:$true] %s144
          %147 = dma.hbm_to_vmem [thread:$0]  %s142, 128, %s145, %s131
        $region20: #{tpu_custom_call.1} parent=15 // pred_fallthru
          _
        // Predicated region
        $region21: #{tpu_custom_call.1} parent=15 // pred_check
          %p148 = pneg %p76
        $region22: #{tpu_custom_call.1} parent=15 // pred_check_branch
          %150 = sbr.rel (%p148) target = $region24
        $region23: #{tpu_custom_call.1} parent=15 // pred_region
          %s151 = sand.u32 %s66, 1
          %s152 = scalar_lea.sflag [#allocation7], %s151
          %s153 = sand.u32 %s66, 1
          %s154 = smul.addr %s153, 2
          %s155 = scalar_lea.vmem [#allocation6], %s154
          %s156 = smul.u32 2, %s22
          %s158 = ssub.s32 32, 32
          %159 = vsyncadd %s152, %s158
          %s160 = smul.addr %s21, 2
          %s161 = sadd.s32 %s156, %s160
          %s162 = smul.addr %s161, 16
          %s163 = scalar_lea.hbm %s1, %s162
          %s165 = sshll.u32 %s155, 4
          %s166 = int_to_ptr.vmem [resolvable:$true] %s165
          %168 = dma.hbm_to_vmem [thread:$0]  %s163, 32, %s166, %s152
        $region24: #{tpu_custom_call.1} parent=15 // pred_fallthru
          _
      $region16: #{tpu_custom_call.1} parent=5 // pred_fallthru
        _
      %p169 = scmp.le.s32.totalorder 1, %s14
      %p170 = scmp.lt.s32.totalorder %s14, 3
      %p171 = pnand %p169, %p170
      %p172 = pneg %p171
      // Predicated region
      $region25: #{tpu_custom_call.1} parent=5 // pred_check
        _
      $region26: #{tpu_custom_call.1} parent=5 // pred_check_branch
        %174 = sbr.rel (%p171) target = $region28
      $region27: #{tpu_custom_call.1} parent=5 // pred_region
        %s175 = ssub.s32 %s14, 1
        %s176 = sand.u32 %s41, 1
        %s177 = scalar_lea.sflag [#allocation5], %s176
        %s178 = sand.u32 %s41, 1
        %s179 = smul.addr %s178, 8
        %s180 = scalar_lea.vmem [#allocation4], %s179
        // Predicated region
        $region29: #{tpu_custom_call.1} parent=27 // pred_check
          %p181 = pneg %p54
        $region30: #{tpu_custom_call.1} parent=27 // pred_check_branch
          %183 = sbr.rel (%p181) target = $region32
        $region31: #{tpu_custom_call.1} parent=27 // pred_region
          %184 = dma.done %s177, 128
        $region32: #{tpu_custom_call.1} parent=27 // pred_fallthru
          _
        %s185 = sand.u32 %s69, 1
        %s186 = scalar_lea.sflag [#allocation7], %s185
        %s187 = sand.u32 %s69, 1
        %s188 = smul.addr %s187, 2
        %s189 = scalar_lea.vmem [#allocation6], %s188
        // Predicated region
        $region33: #{tpu_custom_call.1} parent=27 // pred_check
          %p190 = pneg %p82
        $region34: #{tpu_custom_call.1} parent=27 // pred_check_branch
          %192 = sbr.rel (%p190) target = $region36
        $region35: #{tpu_custom_call.1} parent=27 // pred_region
          %193 = dma.done %s186, 32
        $region36: #{tpu_custom_call.1} parent=27 // pred_fallthru
          _
        %s194 = sand.u32 %s41, 1
        %s195 = scalar_lea.sflag [#allocation5], %s194
        %s196 = sand.u32 %s41, 1
        %s197 = smul.addr %s196, 8
        %s198 = scalar_lea.vmem [#allocation4], %s197
        %p199 = pneg %p54
        %p200 = pneg %p51
        %s201 = sand.u32 %s69, 1
        %s202 = scalar_lea.sflag [#allocation7], %s201
        %s203 = sand.u32 %s69, 1
        %s204 = smul.addr %s203, 2
        %s205 = scalar_lea.vmem [#allocation6], %s204
        %p206 = pneg %p82
        %p207 = pneg %p79
        %p208 = pneg %p108
        %p209 = pneg %p105
        %p210 = scmp.lt.s32.totalorder %s23, 1
        %s211 = scalar_select %p210, %s23, 1
        %s212 = smul.addr %s211, 4
        %s213 = scalar_lea.vmem %s2, %s212
        %s214 = smul.u32 2, %s24
        %s215 = smul.u32 2, %s24
        %p216 = scmp.lt.s32.totalorder %s23, 1
        %s217 = scalar_select %p216, %s23, 1
        %s218 = smul.addr %s217, 4
        %s219 = scalar_lea.vmem %s2, %s218
        %p220 = scmp.eq.s32.totalorder %s24, 0
        // Predicated region
        $region37: #{tpu_custom_call.1} parent=27 // pred_check
          %p221 = pneg %p220
        $region38: #{tpu_custom_call.1} parent=27 // pred_check_branch
          %223 = sbr.rel (%p221) target = $region40
        $region39: #{tpu_custom_call.1} parent=27 // pred_region
          %vm224 = vcmask 3072
          %225 = vst.msk [vmem:[#allocation2] sm:$0xf] %vm224, 0.0
          %226 = vst.msk [vmem:[#allocation3] sm:$0xf] %vm224, 0.0
        $region40: #{tpu_custom_call.1} parent=27 // pred_fallthru
          _
        %v227 = vld [vmem:[%s180] sm:$0xff]
        %v228 = vld [vmem:[%s189] sm:$0x3]
        %v230 = vcombine.high %v227, %v227
        %vm232 = vcmask 1043456
        %v233 = vsel %vm232, %v227, -inf
        %v234 = vrot.slane %v233, 4
        %v235 = vmax.f32 %v233, %v234
        %v236 = vrot.slane %v235, 2
        %v237 = vmax.f32 %v235, %v236
        %v238 = vrot.slane %v237, 1
        %v239 = vmax.f32 %v237, %v238
        %v240 = vsel %vm232, %v230, -inf
        %v241 = vrot.slane %v240, 4
        %v242 = vmax.f32 %v240, %v241
        %v243 = vrot.slane %v242, 2
        %v244 = vmax.f32 %v242, %v243
        %v245 = vrot.slane %v244, 1
        %v246 = vmax.f32 %v244, %v245
        %v249 = vcombine.low %v239, %v246
        %v251 = vsub.f32 %v227, %v249
        %v252 = vmul.f32 %v251, 1.442695
        %v253 = vpow.pop %v252
        %v255 = vcombine.high %v253, %v253
        %v257 = vsel %vm232, %v253, 0.0
        %v258 = vrot.slane %v257, 4
        %v259 = vadd.f32 %v257, %v258
        %v260 = vrot.slane %v259, 2
        %v261 = vadd.f32 %v259, %v260
        %v262 = vrot.slane %v261, 1
        %v263 = vadd.f32 %v261, %v262
        %v264 = vsel %vm232, %v255, 0.0
        %v265 = vrot.slane %v264, 4
        %v266 = vadd.f32 %v264, %v265
        %v267 = vrot.slane %v266, 2
        %v268 = vadd.f32 %v266, %v267
        %v269 = vrot.slane %v268, 1
        %v270 = vadd.f32 %v268, %v269
        %v271 = vrcp.pop %v263
        %v272 = vrcp.pop %v270
        %v273 = vmul.f32 %v263, %v271
        %v274 = vmul.f32 %v270, %v272
        %v275 = vsub.f32 2.0, %v273
        %v276 = vsub.f32 2.0, %v274
        %v277 = vmul.f32 %v271, %v275
        %v278 = vmul.f32 %v272, %v276
        %v281 = vcombine.low %v277, %v278
        %v283 = vmul.f32 %v253, %v281
        %v284 = vlaneseq
        %v285 = vshrl.u32 %v284, 7
        %v286 = vlaneseq
        %v287 = vshrl.u32 %v286, 7
        %v288 = vsub.s32 0, %v287
        %v289 = vrot.slane %v228, %v288
        %v290 = vlaneseq
        %v291 = vshrl.u32 %v290, 7
        %v292 = vsub.s32 1, %v291
        %v293 = vrot.slane %v228, %v292
        %vm294 = vcmp.eq.s32.totalorder %v285, %v289
        %vm295 = vcmp.eq.s32.totalorder %v285, %v293
        %v296 = vsel %vm294, 1, 0
        %v297 = vsel %vm295, 1, 0
        %v298 = vcvt.s32.f32 %v296
        %v299 = vcvt.s32.f32 %v297
        %v300 = vld [vmem:[#allocation2] sm:$0xf]
        %v302 = vcombine.high %v283, %v283
        %v304 = vsel %vm294, %v283, 0.0
        %v305 = vsel %vm295, %v302, 0.0
        %v306 = vsel %vm232, %v304, 0.0
        %v307 = vsel %vm232, %v305, 0.0
        %v308 = vadd.f32 %v306, %v307
        %309 = vadd.xlane.f32.xlu0 %v308
        %v310 = vpop.xlane.xlu0 %309
        %v311 = vadd.f32 %v300, %v310
        %vm312 = vcmask 3072
        %313 = vst.msk [vmem:[#allocation2] sm:$0xf] %vm312, %v311
        %v314 = vld [vmem:[#allocation3] sm:$0xf]
        %v317 = vcombine.low %v298, %v299
        %v319 = vadd.f32 %v283, %v317
        %v321 = vcombine.high %v319, %v319
        %v323 = vsel %vm232, %v319, 0.0
        %v324 = vsel %vm232, %v321, 0.0
        %v325 = vadd.f32 %v323, %v324
        %326 = vadd.xlane.f32.xlu0 %v325
        %v327 = vpop.xlane.xlu0 %326
        %v328 = vadd.f32 %v314, %v327
        %329 = vst.msk [vmem:[#allocation3] sm:$0xf] %vm312, %v328
        // Predicated region
        $region41: #{tpu_custom_call.1} parent=27 // pred_check
          %p330 = pneg %p220
        $region42: #{tpu_custom_call.1} parent=27 // pred_check_branch
          %332 = sbr.rel (%p330) target = $region44
        $region43: #{tpu_custom_call.1} parent=27 // pred_region
          %v333 = vld [vmem:[#allocation2] sm:$0xf]
          %v334 = vmul.f32 %v333, 2.0
          %v335 = vadd.f32 %v334, 1e-06
          %v336 = vld [vmem:[#allocation3] sm:$0xf]
          %v337 = vadd.f32 %v336, 1e-06
          %v338 = vrcp.pop %v337
          %v339 = vmul.f32 %v335, %v338
          %340 = vst.msk [vmem:[%s219] sm:$0xf] %vm312, %v339
        $region44: #{tpu_custom_call.1} parent=27 // pred_fallthru
          _
        %p341 = scmp.lt.s32.totalorder %s23, 1
        %s342 = scalar_select %p341, %s23, 1
        %s343 = smul.addr %s342, 4
        %s344 = scalar_lea.vmem %s2, %s343
        // Predicated region
        $region45: #{tpu_custom_call.1} parent=27 // pred_check
          %p345 = pneg %p105
        $region46: #{tpu_custom_call.1} parent=27 // pred_check_branch
          %347 = sbr.rel (%p345) target = $region48
        $region47: #{tpu_custom_call.1} parent=27 // pred_region
          _
        $region48: #{tpu_custom_call.1} parent=27 // pred_fallthru
          _
      $region28: #{tpu_custom_call.1} parent=5 // pred_fallthru
        _
      %p348 = scmp.le.s32.totalorder 2, %s14
      // Predicated region
      $region49: #{tpu_custom_call.1} parent=5 // pred_check
        %p349 = pneg %p348
      $region50: #{tpu_custom_call.1} parent=5 // pred_check_branch
        %351 = sbr.rel (%p349) target = $region52
      $region51: #{tpu_custom_call.1} parent=5 // pred_region
        %s352 = ssub.s32 %s14, 2
        // Predicated region
        $region53: #{tpu_custom_call.1} parent=51 // pred_check
          %p353 = pneg %p111
        $region54: #{tpu_custom_call.1} parent=51 // pred_check_branch
          %355 = sbr.rel (%p353) target = $region56
        $region55: #{tpu_custom_call.1} parent=51 // pred_region
          %p356 = scmp.lt.s32.totalorder %s25, 1
          %s357 = scalar_select %p356, %s25, 1
          %s358 = smul.addr %s357, 4
          %s359 = scalar_lea.vmem %s2, %s358
        $region56: #{tpu_custom_call.1} parent=51 // pred_fallthru
          _
      $region52: #{tpu_custom_call.1} parent=5 // pred_fallthru
        _
    $region6: #{tpu_custom_call.1} parent=1 // loop_footer
      %s18 = sadd.s32 1, %s14
    $region7: #{tpu_custom_call.1} parent=1 // loop_footer_branch
      %13 = sbr.rel target = $region3
    $region8: #{tpu_custom_call.1} parent=1 // loop_exit
      _
    %360 = vsyncpa [#allocation5], 1
    %s361 = scalar_lea.sflag [#allocation5], 1
    %362 = vsyncpa %s361, 1
    %363 = vsyncpa [#allocation7], 1
    %s364 = scalar_lea.sflag [#allocation7], 1
    %365 = vsyncpa %s364, 1

</llo_original>
